<compile_context>
chip_gen: v5e
topology: v5e:2x2
jax: 0.10.0
libtpu: 0.0.40
codegen_flags: <defaults>
</compile_context>

<pallas_src>
import jax
import jax.numpy as jnp
from jax import lax
from jax.experimental import pallas as pl
from jax.experimental.pallas import tpu as pltpu

EPS = 1e-5  # nn.LayerNorm default


def _round_up(n, m):
    return (n + m - 1) // m * m


def _vmem_capacity_bytes():
    try:
        return int(pltpu.get_tpu_info().vmem_capacity_bytes)
    except Exception:
        return 64 * 1024 * 1024  # conservative (v7x-sized) fallback


def _layernorm_f32(x_ref, gamma_ref, beta_ref):
    """Two-pass LayerNorm over the last dim, computed in f32."""
    x = x_ref[...].astype(jnp.float32)
    inv_d = 1.0 / x.shape[-1]
    mean = jnp.sum(x, axis=-1, keepdims=True) * inv_d
    xc = x - mean
    var = jnp.sum(xc * xc, axis=-1, keepdims=True) * inv_d
    return xc * lax.rsqrt(var + EPS) * gamma_ref[...] + beta_ref[...]


def prenorm_resident_kernel(x_ref, gamma_ref, beta_ref, w_ref, b_ref, o_ref):
    # Whole W is resident in VMEM: LayerNorm stays in registers and feeds the
    # MXU directly (no VMEM scratch round-trip).
    # TODO(synk): chunk the LN reduction with lax.fori_loop(unroll=True) if
    #             bundle dumps ever show vreg spills for very large tr*dim.
    y = _layernorm_f32(x_ref, gamma_ref, beta_ref)
    acc = jnp.dot(y.astype(w_ref.dtype), w_ref[...],
                  preferred_element_type=jnp.float32)
    o_ref[...] = (acc + b_ref[...]).astype(o_ref.dtype)


def prenorm_tiled_kernel(x_ref, gamma_ref, beta_ref, w_ref, b_ref, o_ref, y_ref):
    # W is streamed in column tiles: LayerNorm is computed once per row tile
    # (at column tile 0) into VMEM scratch and reused for every column tile.
    @pl.when(pl.program_id(1) == 0)
    def _():
        y_ref[...] = _layernorm_f32(x_ref, gamma_ref, beta_ref).astype(y_ref.dtype)

    acc = jnp.dot(y_ref[...], w_ref[...], preferred_element_type=jnp.float32)
    o_ref[...] = (acc + b_ref[...]).astype(o_ref.dtype)


def prenorm(x, gamma, beta, w, b, *, tile_rows=256, tile_cols=None,
            matmul_dtype=None):
    """PreNorm with fn = Linear(dim, dim): returns LayerNorm(x) @ w + b.

    x may have arbitrary leading dims; LN / matmul act on the last dim."""
    orig_shape = x.shape
    dim = orig_shape[-1]
    x2 = x.reshape(-1, dim)
    rows = x2.shape[0]
    assert w.shape == (dim, dim)

    if matmul_dtype is not None:
        # Optional bf16 MXU path for f32 inputs (f32 accumulation kept).
        w = w.astype(matmul_dtype)

    x_item = jnp.dtype(x.dtype).itemsize
    w_item = jnp.dtype(w.dtype).itemsize

    # ---- Generation-aware VMEM budget -------------------------------------
    vmem_cap = _vmem_capacity_bytes()        # 64 MiB (v7x) / 128 MiB (v5e, v6e)
    vmem_limit_cap = int(vmem_cap * 0.82)    # headroom for compiler scratch
    w_resident_budget = vmem_limit_cap // 2  # W stays resident while it fits here

    # ---- Column tiling of W (only when a resident W would not fit) --------
    if tile_cols is None:
        tc = dim
        if dim * dim * w_item > w_resident_budget and dim % 256 == 0:
            # Stream W in >=256-wide column tiles (MXU N-width on v6e/v7x).
            while (dim * tc * w_item > w_resident_budget
                   and tc % 256 == 0 and tc >= 512):
                tc //= 2
    else:
        tc = tile_cols
    assert dim % tc == 0 and (tc == dim or tc % 128 == 0)
    n_col = dim // tc
    w_resident = n_col == 1

    # ---- Row tiling --------------------------------------------------------
    sub = 16 if x_item < 4 else 8            # bf16 packs 16 rows / vreg
    tr_target = tile_rows
    if not w_resident:
        tr_target = max(tr_target, 512)      # amortize W re-streaming from HBM
    tr = _round_up(min(tr_target, _round_up(rows, sub)), sub)
    if rows > sub:
        # Keep >= 2 row tiles on the 'parallel' axis (both v7x TCs stay busy).
        tr = min(tr, _round_up(-(-rows // 2), sub))
    padded_rows = _round_up(rows, tr)
    n_row = padded_rows // tr

    xp = x2 if padded_rows == rows else jnp.pad(x2, ((0, padded_rows - rows), (0, 0)))
    # Pre-cast the small affine params once in the wrapper (no per-step casts).
    gamma2 = gamma.reshape(1, dim).astype(jnp.float32)
    beta2 = beta.reshape(1, dim).astype(jnp.float32)
    b2 = b.reshape(1, dim).astype(jnp.float32)

    # ---- Advisory cost: W is re-read from HBM once per row tile when tiled --
    w_hbm_reads = 1 if w_resident else n_row
    cost = pl.CostEstimate(
        flops=2 * padded_rows * dim * dim + 10 * padded_rows * dim,
        transcendentals=padded_rows,             # one rsqrt per row
        bytes_accessed=(2 * padded_rows * dim * x_item     # x in + out
                        + w_hbm_reads * dim * dim * w_item
                        + 3 * dim * 4),
    )

    if w_resident:
        vmem_est = (4 * tr * dim * x_item        # x + out, double-buffered
                    + dim * dim * w_item         # W resident, single-buffered
                    + 3 * dim * 4)               # gamma / beta / bias
        vmem_limit = int(min(max(2 * vmem_est, 32 * 1024 * 1024), vmem_limit_cap))
        out = pl.pallas_call(
            prenorm_resident_kernel,
            out_shape=jax.ShapeDtypeStruct((padded_rows, dim), x.dtype),
            grid_spec=pltpu.PrefetchScalarGridSpec(
                num_scalar_prefetch=0,
                grid=(n_row,),
                in_specs=[
                    pl.BlockSpec((tr, dim), lambda i: (i, 0)),          # x rows
                    pl.BlockSpec((1, dim), lambda i: (0, 0),
                                 pipeline_mode=pl.Buffered(1)),         # gamma
                    pl.BlockSpec((1, dim), lambda i: (0, 0),
                                 pipeline_mode=pl.Buffered(1)),         # beta
                    pl.BlockSpec((dim, dim), lambda i: (0, 0),
                                 pipeline_mode=pl.Buffered(1)),         # W (resident)
                    pl.BlockSpec((1, dim), lambda i: (0, 0),
                                 pipeline_mode=pl.Buffered(1)),         # bias
                ],
                out_specs=pl.BlockSpec((tr, dim), lambda i: (i, 0)),
            ),
            compiler_params=pltpu.CompilerParams(
                dimension_semantics=("parallel",),
                vmem_limit_bytes=vmem_limit,
            ),
            cost_estimate=cost,
        )(xp, gamma2, beta2, w, b2)
    else:
        vmem_est = (2 * tr * dim * x_item        # x, double-buffered
                    + 2 * tr * tc * x_item       # out, double-buffered
                    + 2 * dim * tc * w_item      # W column tiles, double-buffered
                    + tr * dim * w_item          # LN(x) scratch
                    + 2 * dim * 4 + 4 * tc * 4)  # gamma/beta + bias tiles
        vmem_limit = int(min(max(2 * vmem_est, 32 * 1024 * 1024), vmem_limit_cap))
        out = pl.pallas_call(
            prenorm_tiled_kernel,
            out_shape=jax.ShapeDtypeStruct((padded_rows, dim), x.dtype),
            grid_spec=pltpu.PrefetchScalarGridSpec(
                num_scalar_prefetch=0,
                grid=(n_row, n_col),
                in_specs=[
                    pl.BlockSpec((tr, dim), lambda i, j: (i, 0)),       # x rows
                    pl.BlockSpec((1, dim), lambda i, j: (0, 0),
                                 pipeline_mode=pl.Buffered(1)),         # gamma
                    pl.BlockSpec((1, dim), lambda i, j: (0, 0),
                                 pipeline_mode=pl.Buffered(1)),         # beta
                    pl.BlockSpec((dim, tc), lambda i, j: (0, j)),       # W cols
                    pl.BlockSpec((1, tc), lambda i, j: (0, j)),         # bias cols
                ],
                out_specs=pl.BlockSpec((tr, tc), lambda i, j: (i, j)),
                scratch_shapes=[pltpu.VMEM((tr, dim), w.dtype)],        # LN(x)
            ),
            compiler_params=pltpu.CompilerParams(
                dimension_semantics=("parallel", "arbitrary"),
                vmem_limit_bytes=vmem_limit,
            ),
            cost_estimate=cost,
        )(xp, gamma2, beta2, w, b2)

    out = out[:rows] if padded_rows != rows else out
    return out.reshape(orig_shape)


def prenorm_ref(x, gamma, beta, w, b):
    xf = x.astype(jnp.float32)
    mean = jnp.mean(xf, axis=-1, keepdims=True)
    var = jnp.mean((xf - mean) ** 2, axis=-1, keepdims=True)
    y = (xf - mean) * lax.rsqrt(var + EPS) * gamma.astype(jnp.float32) \
        + beta.astype(jnp.float32)
    out = jnp.matmul(y, w.astype(jnp.float32),
                     precision=lax.Precision.HIGHEST) + b.astype(jnp.float32)
    return out.astype(x.dtype)


def _check(key, shape, dtype, tol, **kw):
    dim = shape[-1]
    kx, kwt, kb, kg, kbe = jax.random.split(key, 5)
    x = jax.random.normal(kx, shape, dtype=jnp.float32).astype(dtype)
    gamma = 1.0 + 0.1 * jax.random.normal(kg, (dim,), dtype=jnp.float32)
    beta = 0.1 * jax.random.normal(kbe, (dim,), dtype=jnp.float32)
    w = (jax.random.normal(kwt, (dim, dim), dtype=jnp.float32) * 0.05).astype(dtype)
    b = 0.01 * jax.random.normal(kb, (dim,), dtype=jnp.float32)

    out = jax.block_until_ready(prenorm(x, gamma, beta, w, b, **kw))
    ref = prenorm_ref(x, gamma, beta, w, b)
    assert out.shape == ref.shape, (out.shape, ref.shape)
    ok = jnp.allclose(out.astype(jnp.float32), ref.astype(jnp.float32),
                      atol=tol, rtol=tol)
    assert bool(ok), f"mismatch shape={shape} dtype={dtype} kwargs={kw}"


if __name__ == "__main__":
    key = jax.random.PRNGKey(0)
    k0, k1, k2, k3 = jax.random.split(key, 4)

    # Module-spec shape: x of (batch, seq, dim); resident-W path (regs -> MXU).
    _check(k0, (2, 8, 32), jnp.float32, 1e-2)

    # bf16 operands, lane-dense dim (bf16 MXU, f32 accumulation), resident W.
    _check(k1, (64, 128), jnp.bfloat16, 2e-2)

    # Column-tiled W path (forced via tile_cols; tc >= 256 for MXU N-width).
    _check(k2, (32, 512), jnp.float32, 1e-2, tile_cols=256)

    # Gated bf16 MXU path for f32 inputs (off by default).
    _check(k3, (32, 128), jnp.float32, 2e-2, matmul_dtype=jnp.bfloat16)

    print("KERNEL_OK")
</pallas_src>

<mosaic_0001>
module attributes {stable_mosaic.version = 11 : i64} {
  func.func @prenorm_resident_kernel(%arg0: i32, %arg1: memref<8x32xf32, #tpu.memory_space<vmem>>, %arg2: memref<1x32xf32, #tpu.memory_space<vmem>>, %arg3: memref<1x32xf32, #tpu.memory_space<vmem>>, %arg4: memref<32x32xf32, #tpu.memory_space<vmem>>, %arg5: memref<1x32xf32, #tpu.memory_space<vmem>>, %arg6: memref<8x32xf32, #tpu.memory_space<vmem>>) attributes {dimension_semantics = [#tpu.dimension_semantics<parallel>], iteration_bounds = array<i64: 2>, scalar_prefetch = 0 : i64, scratch_operands = 0 : i64, tpu.core_type = #tpu.core_type<tc>, window_params = [{transform_indices = @transform_0, window_bounds = array<i64: 8, 32>}, {pipeline_mode = #tpu.pipeline_mode<synchronous>, transform_indices = @transform_1, window_bounds = array<i64: 1, 32>}, {pipeline_mode = #tpu.pipeline_mode<synchronous>, transform_indices = @transform_2, window_bounds = array<i64: 1, 32>}, {pipeline_mode = #tpu.pipeline_mode<synchronous>, transform_indices = @transform_3, window_bounds = array<i64: 32, 32>}, {pipeline_mode = #tpu.pipeline_mode<synchronous>, transform_indices = @transform_4, window_bounds = array<i64: 1, 32>}, {transform_indices = @transform_5, window_bounds = array<i64: 8, 32>}]} {
    %c0 = arith.constant 0 : index
    %c0_0 = arith.constant 0 : index
    %0 = vector.load %arg1[%c0, %c0_0] : memref<8x32xf32, #tpu.memory_space<vmem>>, vector<8x32xf32>
    %cst = arith.constant dense<0.000000e+00> : vector<8xf32>
    %1 = vector.multi_reduction <add>, %0, %cst [1] : vector<8x32xf32> to vector<8xf32>
    %2 = vector.shape_cast %1 : vector<8xf32> to vector<8x1xf32>
    %cst_1 = arith.constant 3.125000e-02 : f32
    %3 = vector.broadcast %cst_1 : f32 to vector<8x1xf32>
    %4 = arith.mulf %2, %3 : vector<8x1xf32>
    %5 = vector.broadcast %4 : vector<8x1xf32> to vector<8x32xf32>
    %6 = arith.subf %0, %5 : vector<8x32xf32>
    %7 = arith.mulf %6, %6 : vector<8x32xf32>
    %cst_2 = arith.constant dense<0.000000e+00> : vector<8xf32>
    %8 = vector.multi_reduction <add>, %7, %cst_2 [1] : vector<8x32xf32> to vector<8xf32>
    %9 = vector.shape_cast %8 : vector<8xf32> to vector<8x1xf32>
    %cst_3 = arith.constant 3.125000e-02 : f32
    %10 = vector.broadcast %cst_3 : f32 to vector<8x1xf32>
    %11 = arith.mulf %9, %10 : vector<8x1xf32>
    %cst_4 = arith.constant 9.99999974E-6 : f32
    %12 = vector.broadcast %cst_4 : f32 to vector<8x1xf32>
    %13 = arith.addf %11, %12 : vector<8x1xf32>
    %14 = math.rsqrt %13 : vector<8x1xf32>
    %15 = vector.broadcast %14 : vector<8x1xf32> to vector<8x32xf32>
    %16 = arith.mulf %6, %15 : vector<8x32xf32>
    %c0_5 = arith.constant 0 : index
    %c0_6 = arith.constant 0 : index
    %17 = vector.load %arg2[%c0_5, %c0_6] : memref<1x32xf32, #tpu.memory_space<vmem>>, vector<1x32xf32>
    %18 = vector.broadcast %17 : vector<1x32xf32> to vector<8x32xf32>
    %19 = arith.mulf %16, %18 : vector<8x32xf32>
    %c0_7 = arith.constant 0 : index
    %c0_8 = arith.constant 0 : index
    %20 = vector.load %arg3[%c0_7, %c0_8] : memref<1x32xf32, #tpu.memory_space<vmem>>, vector<1x32xf32>
    %21 = vector.broadcast %20 : vector<1x32xf32> to vector<8x32xf32>
    %22 = arith.addf %19, %21 : vector<8x32xf32>
    %c0_9 = arith.constant 0 : index
    %c0_10 = arith.constant 0 : index
    %23 = vector.load %arg4[%c0_9, %c0_10] : memref<32x32xf32, #tpu.memory_space<vmem>>, vector<32x32xf32>
    %cst_11 = arith.constant dense<0.000000e+00> : vector<8x32xf32>
    %24 = tpu.matmul %22, %23, %cst_11 {dimension_numbers = #tpu.dot_dimension_numbers<[1], [0], [0], [1], [0, 0, 1, 1], [], []>} : vector<8x32xf32>, vector<32x32xf32>, vector<8x32xf32> -> vector<8x32xf32>
    %c0_12 = arith.constant 0 : index
    %c0_13 = arith.constant 0 : index
    %25 = vector.load %arg5[%c0_12, %c0_13] : memref<1x32xf32, #tpu.memory_space<vmem>>, vector<1x32xf32>
    %26 = vector.broadcast %25 : vector<1x32xf32> to vector<8x32xf32>
    %27 = arith.addf %24, %26 : vector<8x32xf32>
    %c0_14 = arith.constant 0 : index
    %c0_15 = arith.constant 0 : index
    %28 = vector.load %arg6[%c0_14, %c0_15] : memref<8x32xf32, #tpu.memory_space<vmem>>, vector<8x32xf32>
    tpu.vector_store %arg6[%c0_14, %c0_15], %27 {strides = array<i32>} : memref<8x32xf32, #tpu.memory_space<vmem>>, vector<8x32xf32>,
    return
  }
  func.func @transform_0(%arg0: i32) -> (i32, i32) {
    %c0_i32 = arith.constant 0 : i32
    %c0_i32_0 = arith.constant 0 : i32
    return %arg0, %c0_i32 : i32, i32
  }
  func.func @transform_1(%arg0: i32) -> (i32, i32) {
    %c0_i32 = arith.constant 0 : i32
    %c0_i32_0 = arith.constant 0 : i32
    %c0_i32_1 = arith.constant 0 : i32
    return %c0_i32, %c0_i32_0 : i32, i32
  }
  func.func @transform_2(%arg0: i32) -> (i32, i32) {
    %c0_i32 = arith.constant 0 : i32
    %c0_i32_0 = arith.constant 0 : i32
    %c0_i32_1 = arith.constant 0 : i32
    return %c0_i32, %c0_i32_0 : i32, i32
  }
  func.func @transform_3(%arg0: i32) -> (i32, i32) {
    %c0_i32 = arith.constant 0 : i32
    %c0_i32_0 = arith.constant 0 : i32
    %c0_i32_1 = arith.constant 0 : i32
    return %c0_i32, %c0_i32_0 : i32, i32
  }
  func.func @transform_4(%arg0: i32) -> (i32, i32) {
    %c0_i32 = arith.constant 0 : i32
    %c0_i32_0 = arith.constant 0 : i32
    %c0_i32_1 = arith.constant 0 : i32
    return %c0_i32, %c0_i32_0 : i32, i32
  }
  func.func @transform_5(%arg0: i32) -> (i32, i32) {
    %c0_i32 = arith.constant 0 : i32
    %c0_i32_0 = arith.constant 0 : i32
    return %arg0, %c0_i32 : i32, i32
  }
}

</mosaic_0001>

<llo_original>
// kernel: tpu_custom_call.1
$region0: #{tpu_custom_call.1}
  #allocation0 [shape = 'u32[]', space=smem, size = 0x4, offset = 0x4, fixed_abs, tag = 'smem constant byte address 0x4 - core index']
  #allocation1 [shape = 'u32[72,128]{1,0:T(1,128)}', space=vmem, size = 0x9000, scoped, tag = 'internal scratch']
  %s0 = inlined_call_operand.hbm [shape: f32[16,32], index: 0, kind: input, shape index: {}]
  %s1 = inlined_call_operand.hbm [shape: f32[1,32], index: 1, kind: input, shape index: {}]
  %s2 = inlined_call_operand.vmem [shape: f32[1,32], index: 2, kind: input, shape index: {}]
  %s3 = inlined_call_operand.hbm [shape: f32[32,32], index: 3, kind: input, shape index: {}]
  %s4 = inlined_call_operand.vmem [shape: f32[1,32], index: 4, kind: input, shape index: {}]
  %s5 = inlined_call_operand.hbm [shape: f32[16,32], index: 5, kind: output, shape index: {}]
  %s6 = sld [smem:[#allocation0]]
  $region65: #{tpu_custom_call.1} parent=0
    _
  %s8 = ssub.s32 1, %s6
  %s9 = scalar_select 0, %s8, %s6
  $region1: #{tpu_custom_call.1} parent=0
    #allocation2 [shape = 'u8[8192]{0}', space=vmem, size = 0x2000, scoped, tag = 'input window, operand 0']
    #allocation3 [shape = 's32[2]{0}', space=sflag, size = 0x8, scoped, tag = 'scoped memory for tpu_custom_call.1']
    #allocation4 [shape = 's32[2]{0}', space=sflag, size = 0x8, scoped, tag = 'scoped memory for tpu_custom_call.1']
    #allocation5 [shape = 'u8[512]{0}', space=vmem, size = 0x400, scoped, tag = 'input window, operand 1, single buffered']
    #allocation6 [shape = 's32[1]{0}', space=sflag, size = 0x4, scoped, tag = 'scoped memory for tpu_custom_call.1']
    #allocation7 [shape = 'u8[16384]{0}', space=vmem, size = 0x4000, scoped, tag = 'input window, operand 3, single buffered']
    #allocation8 [shape = 'u8[8192]{0}', space=vmem, size = 0x2000, scoped, tag = 'output window, operand 0']
    %10 = vsyncpa [#allocation3], 0
    %s11 = scalar_lea.sflag [#allocation3], 1
    %12 = vsyncpa %s11, 0
    %13 = vsyncpa [#allocation6], 0
    %14 = vsyncpa [#allocation4], 0
    %s15 = scalar_lea.sflag [#allocation4], 1
    %16 = vsyncpa %s15, 0
    loop: start=0, step=1, limit=4
    $region2: #{tpu_custom_call.1} parent=1 // loop_pre_header
      _
    $region3: #{tpu_custom_call.1} parent=1 // loop_header
      %s18 = sphi 0, %s22
      %p19 = scmp.ge.s32.totalorder %s18, 4
      %s28 = sphi 0, %s30
      %s31 = sphi 0, %s28
      %s32 = sphi 0, %s31
      %s48 = sphi 0, %s32
      %s52 = sphi 0, %s52
      %s54 = sphi 0, %s52
      %s55 = sphi 0, %s54
      %s69 = sphi 0, %s55
      %s73 = sphi 0, %s73
      %s75 = sphi 0, %s73
      %s76 = sphi 0, %s75
      %s90 = sphi 0, %s76
      %s94 = sphi 0, %s94
      %s96 = sphi 0, %s94
      %s97 = sphi 0, %s96
      %s111 = sphi 0, %s97
      %s115 = sphi 0, %s115
      %s117 = sphi 0, %s115
      %s118 = sphi 0, %s117
      %s132 = sphi 0, %s118
      %s138 = sphi 0, %s140
      %s141 = sphi 0, %s138
      %s142 = sphi 0, %s141
      %s158 = sphi 0, %s142
    $region4: #{tpu_custom_call.1} parent=1 // loop_header_branch
      %21 = sbr.rel (%p19) target = $region8
    $region5: #{tpu_custom_call.1} parent=1 // loop_body
      %s23 = ssub.s32 %s18, 1
      %s24 = ssub.s32 %s18, 2
      %s25 = sadd.s32 %s18, 1
      %s26 = ssub.s32 %s18, %s25
      %p27 = scmp.eq.s32.totalorder %s26, 0
      %s29 = sadd.s32 %s28, 1
      %s30 = scalar_select %p27, %s28, %s29
      %p33 = pneg %p27
      %p34 = scmp.eq.s32.totalorder %s18, 1
      %p35 = por %p33, %p34
      %p36 = scmp.ne.s32.totalorder %s28, %s31
      %p37 = scmp.eq.s32.totalorder %s18, 0
      %p38 = por %p36, %p37
      %p39 = scmp.ne.s32.totalorder %s28, %s31
      %p40 = scmp.eq.s32.totalorder %s23, 1
      %p41 = por %p39, %p40
      %p42 = scmp.ne.s32.totalorder %s31, %s32
      %p43 = scmp.eq.s32.totalorder %s23, 0
      %p44 = por %p42, %p43
      %p45 = scmp.ne.s32.totalorder %s31, %s32
      %p46 = scmp.eq.s32.totalorder %s24, 1
      %p47 = por %p45, %p46
      %p49 = scmp.ne.s32.totalorder %s32, %s48
      %p50 = scmp.eq.s32.totalorder %s24, 0
      %p51 = por %p49, %p50
      %s53 = sadd.s32 %s52, 1
      %p56 = scmp.eq.s32.totalorder %s18, 1
      %p57 = scmp.ne.s32.totalorder %s52, %s54
      %p58 = scmp.eq.s32.totalorder %s18, 0
      %p59 = por %p57, %p58
      %p60 = scmp.ne.s32.totalorder %s52, %s54
      %p61 = scmp.eq.s32.totalorder %s23, 1
      %p62 = por %p60, %p61
      %p63 = scmp.ne.s32.totalorder %s54, %s55
      %p64 = scmp.eq.s32.totalorder %s23, 0
      %p65 = por %p63, %p64
      %p66 = scmp.ne.s32.totalorder %s54, %s55
      %p67 = scmp.eq.s32.totalorder %s24, 1
      %p68 = por %p66, %p67
      %p70 = scmp.ne.s32.totalorder %s55, %s69
      %p71 = scmp.eq.s32.totalorder %s24, 0
      %p72 = por %p70, %p71
      %s74 = sadd.s32 %s73, 1
      %p77 = scmp.eq.s32.totalorder %s18, 1
      %p78 = scmp.ne.s32.totalorder %s73, %s75
      %p79 = scmp.eq.s32.totalorder %s18, 0
      %p80 = por %p78, %p79
      %p81 = scmp.ne.s32.totalorder %s73, %s75
      %p82 = scmp.eq.s32.totalorder %s23, 1
      %p83 = por %p81, %p82
      %p84 = scmp.ne.s32.totalorder %s75, %s76
      %p85 = scmp.eq.s32.totalorder %s23, 0
      %p86 = por %p84, %p85
      %p87 = scmp.ne.s32.totalorder %s75, %s76
      %p88 = scmp.eq.s32.totalorder %s24, 1
      %p89 = por %p87, %p88
      %p91 = scmp.ne.s32.totalorder %s76, %s90
      %p92 = scmp.eq.s32.totalorder %s24, 0
      %p93 = por %p91, %p92
      %s95 = sadd.s32 %s94, 1
      %p98 = scmp.eq.s32.totalorder %s18, 1
      %p99 = scmp.ne.s32.totalorder %s94, %s96
      %p100 = scmp.eq.s32.totalorder %s18, 0
      %p101 = por %p99, %p100
      %p102 = scmp.ne.s32.totalorder %s94, %s96
      %p103 = scmp.eq.s32.totalorder %s23, 1
      %p104 = por %p102, %p103
      %p105 = scmp.ne.s32.totalorder %s96, %s97
      %p106 = scmp.eq.s32.totalorder %s23, 0
      %p107 = por %p105, %p106
      %p108 = scmp.ne.s32.totalorder %s96, %s97
      %p109 = scmp.eq.s32.totalorder %s24, 1
      %p110 = por %p108, %p109
      %p112 = scmp.ne.s32.totalorder %s97, %s111
      %p113 = scmp.eq.s32.totalorder %s24, 0
      %p114 = por %p112, %p113
      %s116 = sadd.s32 %s115, 1
      %p119 = scmp.eq.s32.totalorder %s18, 1
      %p120 = scmp.ne.s32.totalorder %s115, %s117
      %p121 = scmp.eq.s32.totalorder %s18, 0
      %p122 = por %p120, %p121
      %p123 = scmp.ne.s32.totalorder %s115, %s117
      %p124 = scmp.eq.s32.totalorder %s23, 1
      %p125 = por %p123, %p124
      %p126 = scmp.ne.s32.totalorder %s117, %s118
      %p127 = scmp.eq.s32.totalorder %s23, 0
      %p128 = por %p126, %p127
      %p129 = scmp.ne.s32.totalorder %s117, %s118
      %p130 = scmp.eq.s32.totalorder %s24, 1
      %p131 = por %p129, %p130
      %p133 = scmp.ne.s32.totalorder %s118, %s132
      %p134 = scmp.eq.s32.totalorder %s24, 0
      %p135 = por %p133, %p134
      %s136 = ssub.s32 %s18, %s25
      %p137 = scmp.eq.s32.totalorder %s136, 0
      %s139 = sadd.s32 %s138, 1
      %s140 = scalar_select %p137, %s138, %s139
      %p143 = pneg %p137
      %p144 = scmp.eq.s32.totalorder %s18, 1
      %p145 = por %p143, %p144
      %p146 = scmp.ne.s32.totalorder %s138, %s141
      %p147 = scmp.eq.s32.totalorder %s18, 0
      %p148 = por %p146, %p147
      %p149 = scmp.ne.s32.totalorder %s138, %s141
      %p150 = scmp.eq.s32.totalorder %s23, 1
      %p151 = por %p149, %p150
      %p152 = scmp.ne.s32.totalorder %s141, %s142
      %p153 = scmp.eq.s32.totalorder %s23, 0
      %p154 = por %p152, %p153
      %p155 = scmp.ne.s32.totalorder %s141, %s142
      %p156 = scmp.eq.s32.totalorder %s24, 1
      %p157 = por %p155, %p156
      %p159 = scmp.ne.s32.totalorder %s142, %s158
      %p160 = scmp.eq.s32.totalorder %s24, 0
      %p161 = por %p159, %p160
      %p162 = scmp.le.s32.totalorder 1, %s18
      %p163 = scmp.lt.s32.totalorder %s18, 3
      %p164 = pnand %p162, %p163
      %p165 = pneg %p164
      // Predicated region
      $region9: #{tpu_custom_call.1} parent=5 // pred_check
        _
      $region10: #{tpu_custom_call.1} parent=5 // pred_check_branch
        %167 = sbr.rel (%p164) target = $region12
      $region11: #{tpu_custom_call.1} parent=5 // pred_region
        %s168 = ssub.s32 %s18, 1
        // Predicated region
        $region13: #{tpu_custom_call.1} parent=11 // pred_check
          %p169 = pneg %p65
        $region14: #{tpu_custom_call.1} parent=11 // pred_check_branch
          %171 = sbr.rel (%p169) target = $region16
        $region15: #{tpu_custom_call.1} parent=11 // pred_region
          %173 = vsyncadd [#allocation6], 0
          %s175 = sshll.u32 %s1, 4
          %s176 = int_to_ptr.hbm [resolvable:$true] %s175
          %s177 = sshll.u32 [#allocation5], 4
          %s178 = int_to_ptr.vmem [resolvable:$true] %s177
          %180 = dma.hbm_to_vmem [thread:$0]  %s176, 16, %s178, [#allocation6]
        $region16: #{tpu_custom_call.1} parent=11 // pred_fallthru
          _
        // Predicated region
        $region17: #{tpu_custom_call.1} parent=11 // pred_check
          %p181 = pneg %p86
        $region18: #{tpu_custom_call.1} parent=11 // pred_check_branch
          %183 = sbr.rel (%p181) target = $region20
        $region19: #{tpu_custom_call.1} parent=11 // pred_region
          _
        $region20: #{tpu_custom_call.1} parent=11 // pred_fallthru
          _
        // Predicated region
        $region21: #{tpu_custom_call.1} parent=11 // pred_check
          %p184 = pneg %p107
        $region22: #{tpu_custom_call.1} parent=11 // pred_check_branch
          %186 = sbr.rel (%p184) target = $region24
        $region23: #{tpu_custom_call.1} parent=11 // pred_region
          %188 = vsyncadd [#allocation6], 0
          %s189 = sshll.u32 %s3, 4
          %s190 = int_to_ptr.hbm [resolvable:$true] %s189
          %s191 = sshll.u32 [#allocation7], 4
          %s192 = int_to_ptr.vmem [resolvable:$true] %s191
          %197 = dma.hbm_to_vmem [thread:$0]  %s190, 512, %s192, [#allocation6], 128, 128, 8
        $region24: #{tpu_custom_call.1} parent=11 // pred_fallthru
          _
        // Predicated region
        $region25: #{tpu_custom_call.1} parent=11 // pred_check
          %p198 = pneg %p128
        $region26: #{tpu_custom_call.1} parent=11 // pred_check_branch
          %200 = sbr.rel (%p198) target = $region28
        $region27: #{tpu_custom_call.1} parent=11 // pred_region
          _
        $region28: #{tpu_custom_call.1} parent=11 // pred_fallthru
          _
      $region12: #{tpu_custom_call.1} parent=5 // pred_fallthru
        _
      %p201 = scmp.lt.s32.totalorder %s18, 2
      // Predicated region
      $region29: #{tpu_custom_call.1} parent=5 // pred_check
        %p202 = pneg %p201
      $region30: #{tpu_custom_call.1} parent=5 // pred_check_branch
        %204 = sbr.rel (%p202) target = $region32
      $region31: #{tpu_custom_call.1} parent=5 // pred_region
        // Predicated region
        $region33: #{tpu_custom_call.1} parent=31 // pred_check
          %p205 = pneg %p38
        $region34: #{tpu_custom_call.1} parent=31 // pred_check_branch
          %207 = sbr.rel (%p205) target = $region36
        $region35: #{tpu_custom_call.1} parent=31 // pred_region
          %s208 = sand.u32 %s28, 1
          %s209 = scalar_lea.sflag [#allocation3], %s208
          %s210 = sand.u32 %s28, 1
          %s211 = smul.addr %s210, 8
          %s212 = scalar_lea.vmem [#allocation2], %s211
          %214 = vsyncadd %s209, 0
          %s215 = smul.addr %s18, 8
          %s216 = scalar_lea.hbm %s0, %s215
          %s218 = sshll.u32 %s216, 4
          %s219 = int_to_ptr.hbm [resolvable:$true] %s218
          %s220 = sshll.u32 %s212, 4
          %s221 = int_to_ptr.vmem [resolvable:$true] %s220
          %223 = dma.hbm_to_vmem [thread:$0]  %s219, 128, %s221, %s209
        $region36: #{tpu_custom_call.1} parent=31 // pred_fallthru
          _
      $region32: #{tpu_custom_call.1} parent=5 // pred_fallthru
        _
      %p224 = scmp.le.s32.totalorder 1, %s18
      %p225 = scmp.lt.s32.totalorder %s18, 3
      %p226 = pnand %p224, %p225
      %p227 = pneg %p226
      // Predicated region
      $region37: #{tpu_custom_call.1} parent=5 // pred_check
        _
      $region38: #{tpu_custom_call.1} parent=5 // pred_check_branch
        %229 = sbr.rel (%p226) target = $region40
      $region39: #{tpu_custom_call.1} parent=5 // pred_region
        %s230 = ssub.s32 %s18, 1
        %s231 = sand.u32 %s31, 1
        %s232 = scalar_lea.sflag [#allocation3], %s231
        %s233 = sand.u32 %s31, 1
        %s234 = smul.addr %s233, 8
        %s235 = scalar_lea.vmem [#allocation2], %s234
        // Predicated region
        $region41: #{tpu_custom_call.1} parent=39 // pred_check
          %p236 = pneg %p44
        $region42: #{tpu_custom_call.1} parent=39 // pred_check_branch
          %238 = sbr.rel (%p236) target = $region44
        $region43: #{tpu_custom_call.1} parent=39 // pred_region
          %240 = dma.done %s232, 128
        $region44: #{tpu_custom_call.1} parent=39 // pred_fallthru
          _
        // Predicated region
        $region45: #{tpu_custom_call.1} parent=39 // pred_check
          %p241 = pneg %p65
        $region46: #{tpu_custom_call.1} parent=39 // pred_check_branch
          %243 = sbr.rel (%p241) target = $region48
        $region47: #{tpu_custom_call.1} parent=39 // pred_region
          %245 = dma.done [#allocation6], 16
        $region48: #{tpu_custom_call.1} parent=39 // pred_fallthru
          _
        // Predicated region
        $region49: #{tpu_custom_call.1} parent=39 // pred_check
          %p246 = pneg %p107
        $region50: #{tpu_custom_call.1} parent=39 // pred_check_branch
          %248 = sbr.rel (%p246) target = $region52
        $region51: #{tpu_custom_call.1} parent=39 // pred_region
          %250 = dma.done [#allocation6], 512
        $region52: #{tpu_custom_call.1} parent=39 // pred_fallthru
          _
        %s251 = sand.u32 %s31, 1
        %s252 = scalar_lea.sflag [#allocation3], %s251
        %s253 = sand.u32 %s31, 1
        %s254 = smul.addr %s253, 8
        %s255 = scalar_lea.vmem [#allocation2], %s254
        %p256 = pneg %p44
        %p257 = pneg %p41
        %p258 = pneg %p65
        %p259 = pneg %p62
        %p260 = pneg %p86
        %p261 = pneg %p83
        %p262 = pneg %p107
        %p263 = pneg %p104
        %p264 = pneg %p128
        %p265 = pneg %p125
        %p266 = pneg %p154
        %p267 = pneg %p151
        %s268 = sand.u32 %s141, 1
        %s269 = scalar_lea.sflag [#allocation4], %s268
        %s270 = sand.u32 %s141, 1
        %s271 = smul.addr %s270, 8
        %s272 = scalar_lea.vmem [#allocation8], %s271
        %v273 = vld [vmem:[%s235] sm:$0xff]
        %vm274 = vcmask 261120
        %v275 = vsel %vm274, %v273, 0.0
        %276 = vadd.xlane.f32.xlu0 %v275
        %v277 = vpop.xlane.xlu0 %276
        %v278 = vmul.f32 %v277, 0.03125
        %v279 = vsub.f32 %v273, %v278
        %v280 = vmul.f32 %v279, %v279
        %v281 = vsel %vm274, %v280, 0.0
        %282 = vadd.xlane.f32.xlu0 %v281
        %v283 = vpop.xlane.xlu0 %282
        %v284 = vmul.f32 %v283, 0.03125
        %v285 = vadd.f32 %v284, 1e-05
        %v286 = vrsqrt.pop %v285
        %v287 = vmul.f32 %v286, %v285
        %v288 = vmul.f32 %v287, %v286
        %v289 = vmul.f32 0.5, %v288
        %v290 = vsub.f32 1.5, %v289
        %v291 = vmul.f32 %v286, %v290
        %vm292 = vweird.f32 %v285
        %vm293 = vweird.f32 %v286
        %vm294 = vmor %vm292, %vm293
        %v295 = vsel %vm294, %v286, %v291
        %v296 = vmul.f32 %v279, %v295
        %v297 = vld [vmem:[#allocation5] sm:$0x1]
        %v299 = vperm.slane %v297, 0
        %v301 = vmul.f32 %v296, %v299
        %v302 = vld [vmem:[%s2] sm:$0x1]
        %v304 = vperm.slane %v302, 0
        %v306 = vadd.f32 %v301, %v304
        %v307 = vld [vmem:[#allocation7] sm:$0xff]
        %v308 = vld [vmem:[#allocation7 + $0x8] sm:$0xff]
        %v309 = vld [vmem:[#allocation7 + $0x10] sm:$0xff]
        %v310 = vld [vmem:[#allocation7 + $0x18] sm:$0xff]
        %v311 = vld [vmem:[%s4] sm:$0x1]
        %v313 = vperm.slane %v311, 0
        %v316 = vsel %vm274, %v306, 0
        %318 = vmatpush.msra.mxu0 0.0
        %319 = vmatpush.msra.mxu0 0.0
        %320 = vmatpush.msra.mxu0 0.0
        %321 = vmatpush.msra.mxu0 0.0
        %322 = vmatpush.msra.mxu0 0.0
        %323 = vmatpush.msra.mxu0 0.0
        %324 = vmatpush.msra.mxu0 0.0
        %325 = vmatpush.msra.mxu0 0.0
        %326 = vmatpush.msra.mxu0 0.0
        %327 = vmatpush.msra.mxu0 0.0
        %328 = vmatpush.msra.mxu0 0.0
        %329 = vmatpush.msra.mxu0 0.0
        %330 = vmatpush.msra.mxu0 %v310
        %331 = vmatpush.msra.mxu0 %v309
        %332 = vmatpush.msra.mxu0 %v308
        %333 = vmatpush.msra.mxu0 %v307
        %334 = vmatmul.f32.gmra.mxu0 %v316
        %v335 = vpop.f32.mrf.mxu0
        %v336 = vadd.f32 %v313, %v335
        %337 = vdwg.mxu0
        %338 = vst.msk [vmem:[%s272] sm:$0xff] %vm274, %v336
        %s339 = sand.u32 %s141, 1
        %s340 = scalar_lea.sflag [#allocation4], %s339
        %s341 = sand.u32 %s141, 1
        %s342 = smul.addr %s341, 8
        %s343 = scalar_lea.vmem [#allocation8], %s342
        // Predicated region
        $region53: #{tpu_custom_call.1} parent=39 // pred_check
          %p344 = pneg %p151
        $region54: #{tpu_custom_call.1} parent=39 // pred_check_branch
          %346 = sbr.rel (%p344) target = $region56
        $region55: #{tpu_custom_call.1} parent=39 // pred_region
          %348 = vsyncadd %s340, 0
          %s349 = smul.addr %s23, 8
          %s350 = scalar_lea.hbm %s5, %s349
          %s352 = sshll.u32 %s343, 4
          %s353 = int_to_ptr.vmem [resolvable:$true] %s352
          %s354 = sshll.u32 %s350, 4
          %s355 = int_to_ptr.hbm [resolvable:$true] %s354
          %357 = dma.vmem_to_hbm [thread:$0]  %s353, 128, %s355, %s340
        $region56: #{tpu_custom_call.1} parent=39 // pred_fallthru
          _
      $region40: #{tpu_custom_call.1} parent=5 // pred_fallthru
        _
      %p358 = scmp.le.s32.totalorder 2, %s18
      // Predicated region
      $region57: #{tpu_custom_call.1} parent=5 // pred_check
        %p359 = pneg %p358
      $region58: #{tpu_custom_call.1} parent=5 // pred_check_branch
        %361 = sbr.rel (%p359) target = $region60
      $region59: #{tpu_custom_call.1} parent=5 // pred_region
        %s362 = ssub.s32 %s18, 2
        // Predicated region
        $region61: #{tpu_custom_call.1} parent=59 // pred_check
          %p363 = pneg %p157
        $region62: #{tpu_custom_call.1} parent=59 // pred_check_branch
          %365 = sbr.rel (%p363) target = $region64
        $region63: #{tpu_custom_call.1} parent=59 // pred_region
          %s366 = sand.u32 %s142, 1
          %s367 = scalar_lea.sflag [#allocation4], %s366
          %s368 = sand.u32 %s142, 1
          %s369 = smul.addr %s368, 8
          %s370 = scalar_lea.vmem [#allocation8], %s369
          %372 = dma.done %s367, 128
        $region64: #{tpu_custom_call.1} parent=59 // pred_fallthru
          _
      $region60: #{tpu_custom_call.1} parent=5 // pred_fallthru
        _
    $region6: #{tpu_custom_call.1} parent=1 // loop_footer
      %s22 = sadd.s32 1, %s18
    $region7: #{tpu_custom_call.1} parent=1 // loop_footer_branch
      %17 = sbr.rel target = $region3
    $region8: #{tpu_custom_call.1} parent=1 // loop_exit
      _
    %373 = vsyncpa [#allocation3], 1
    %s374 = scalar_lea.sflag [#allocation3], 1
    %375 = vsyncpa %s374, 1
    %376 = vsyncpa [#allocation6], 1
    %377 = vsyncpa [#allocation4], 1
    %s378 = scalar_lea.sflag [#allocation4], 1
    %379 = vsyncpa %s378, 1

</llo_original>
